<compile_context>
chip_gen: v6e
topology: v6e:2x2x1
jax: 0.10.0
libtpu: 0.0.40
codegen_flags: <defaults>
</compile_context>

<pallas_src>
import functools

import jax
import jax.numpy as jnp
from jax.experimental import pallas as pl
from jax.experimental.pallas import tpu as pltpu

LANE = 128


def _round_up(n, m):
    return ((n + m - 1) // m) * m


# --------------- Kernel A: projection + attention coefficients ---------------

def _proj_kernel(x_ref, w_ref, att_ref, xl_ref, coef_ref):
    """xl = x @ W; coef[:, h] = a_src_h, coef[:, H+h] = a_dst_h (one matmul)."""
    x = x_ref[...].astype(jnp.bfloat16)                      # [TM, Fx]
    w = w_ref[...]                                           # [Fx, HC_pad] bf16
    xl = jnp.dot(x, w, preferred_element_type=jnp.float32)   # [TM, HC_pad] f32
    coef_ref[...] = jnp.dot(xl.astype(jnp.bfloat16), att_ref[...],
                            preferred_element_type=jnp.float32)  # [TM, A_pad]
    xl_ref[...] = xl.astype(jnp.bfloat16)


# --------------- Kernel B: masked softmax attention + aggregation ------------

def _attn_kernel(H, apply_relu,
                 dstc_ref, srcT_ref, xl_ref, adj_ref, hsel_ref, bias_ref,
                 out_ref):
    mask = adj_ref[...] > 0                      # [TM, N]  (hoisted, one pass)
    xl = xl_ref[...]                             # [N, HC_pad] bf16
    neg = jnp.float32(-1e30)
    acc = jnp.zeros(out_ref.shape, jnp.float32)  # [TM, HC_pad] lane-dense acc
    for h in range(H):                           # H static -> unrolled
        a_dst = dstc_ref[:, H + h:H + h + 1]     # [TM, 1]
        a_src = srcT_ref[h:h + 1, :]             # [1, N]
        s = a_dst + a_src                        # [TM, N]
        s = jnp.where(s > 0, s, 0.2 * s)         # LeakyReLU(0.2)
        s = jnp.where(mask, s, neg)              # single mask pass
        m = jnp.max(s, axis=-1, keepdims=True)
        e = jnp.exp(s - m)                       # masked entries underflow to 0
        inv = pl.reciprocal(jnp.sum(e, axis=-1, keepdims=True), approx=True)
        # Full-width matmul keeps the MXU >=128 lanes busy; head selection and
        # 1/denom are applied post-matmul on [TM, HC_pad] (cheap VPU work).
        agg = jnp.dot(e.astype(jnp.bfloat16), xl,
                      preferred_element_type=jnp.float32)    # [TM, HC_pad]
        acc = acc + agg * (inv * hsel_ref[h:h + 1, :])
    out = acc + bias_ref[...]
    if apply_relu:
        out = jnp.maximum(out, 0.0)
    out_ref[...] = out


# ----------------------------- layer wrapper ---------------------------------

def gat_conv_pallas(x_pad, adj_bf, params, apply_relu, tm):
    """One GATConv layer. x_pad: [N_pad, Fx] f32, adj_bf: [N_pad, N_pad] bf16."""
    n_pad, fx = x_pad.shape
    W, att, hsel, bias, H = (params["W"], params["att"], params["hsel"],
                             params["bias"], params["heads"])
    hc_pad = W.shape[1]
    a_pad = att.shape[1]
    grid = (n_pad // tm,)

    xl, coef = pl.pallas_call(
        _proj_kernel,
        out_shape=(jax.ShapeDtypeStruct((n_pad, hc_pad), jnp.bfloat16),
                   jax.ShapeDtypeStruct((n_pad, a_pad), jnp.float32)),
        grid=grid,
        in_specs=[
            pl.BlockSpec((tm, fx), lambda i: (i, 0)),
            pl.BlockSpec((fx, hc_pad), lambda i: (0, 0)),
            pl.BlockSpec((hc_pad, a_pad), lambda i: (0, 0)),
        ],
        out_specs=(pl.BlockSpec((tm, hc_pad), lambda i: (i, 0)),
                   pl.BlockSpec((tm, a_pad), lambda i: (i, 0))),
        compiler_params=pltpu.CompilerParams(
            dimension_semantics=("parallel",)),
    )(x_pad, W, att)

    # Source coefficients transposed once per layer (XLA glue between kernels)
    # so the kernel reads a [1, N] row instead of transposing in-kernel.
    src_t = jnp.transpose(coef[:, :H])           # [H, N_pad]

    cost = pl.CostEstimate(
        flops=2 * H * n_pad * n_pad * hc_pad + 6 * H * n_pad * n_pad,
        transcendentals=H * n_pad * n_pad,
        bytes_accessed=(2 * n_pad * n_pad                       # adj (bf16)
                        + grid[0] * 2 * n_pad * hc_pad          # xl per tile
                        + 4 * n_pad * (a_pad + hc_pad)),
    )

    out = pl.pallas_call(
        functools.partial(_attn_kernel, H, apply_relu),
        out_shape=jax.ShapeDtypeStruct((n_pad, hc_pad), jnp.float32),
        grid=grid,
        in_specs=[
            pl.BlockSpec((tm, a_pad), lambda i: (i, 0)),        # dst coeffs tile
            pl.BlockSpec((H, n_pad), lambda i: (0, 0)),         # src coeffs^T
            pl.BlockSpec((n_pad, hc_pad), lambda i: (0, 0)),    # x_l (sources)
            pl.BlockSpec((tm, n_pad), lambda i: (i, 0)),        # adj row tile
            pl.BlockSpec((H, hc_pad), lambda i: (0, 0)),        # head col masks
            pl.BlockSpec((1, hc_pad), lambda i: (0, 0)),        # bias
        ],
        out_specs=pl.BlockSpec((tm, hc_pad), lambda i: (i, 0)),
        compiler_params=pltpu.CompilerParams(
            dimension_semantics=("parallel",)),
        cost_estimate=cost,
    )(coef, src_t, xl, adj_bf, hsel, bias)
    return out


# ------------------------------ parameters -----------------------------------

def init_gat_params(key, in_dim, in_pad, out_channels, heads):
    """Glorot-style init, pre-packed/padded for the kernels."""
    k1, k2, k3 = jax.random.split(key, 3)
    hc = heads * out_channels
    hc_pad = _round_up(hc, LANE)
    a_pad = _round_up(2 * heads, LANE)

    w = jax.random.normal(k1, (in_dim, hc), jnp.float32) * jnp.sqrt(
        2.0 / (in_dim + hc))
    a_scale = jnp.sqrt(2.0 / (out_channels + 1))
    a_src = jax.random.normal(k2, (heads, out_channels), jnp.float32) * a_scale
    a_dst = jax.random.normal(k3, (heads, out_channels), jnp.float32) * a_scale

    W_pad = jnp.zeros((in_pad, hc_pad), jnp.float32)
    W_pad = W_pad.at[:in_dim, :hc].set(w).astype(jnp.bfloat16)

    # Block-structured matrix: x_l @ att -> [a_src_0..a_src_{H-1}, a_dst_0..]
    att = jnp.zeros((hc_pad, a_pad), jnp.float32)
    hsel = jnp.zeros((heads, hc_pad), jnp.float32)
    for h in range(heads):
        lo, hi = h * out_channels, (h + 1) * out_channels
        att = att.at[lo:hi, h].set(a_src[h])
        att = att.at[lo:hi, heads + h].set(a_dst[h])
        hsel = hsel.at[h, lo:hi].set(1.0)
    att = att.astype(jnp.bfloat16)

    bias = jnp.zeros((1, hc_pad), jnp.float32)
    return dict(W=W_pad, att=att, hsel=hsel, bias=bias,
                heads=heads, out_channels=out_channels, hc=hc)


def build_dense_adj(edge_index, num_nodes, n_pad):
    """adj[dst, src] = 1 for each edge + self-loops; shipped as bf16."""
    # NOTE: duplicate edges collapse (dense mask), unlike PyG's sparse softmax.
    src, dst = edge_index[0], edge_index[1]
    adj = jnp.zeros((n_pad, n_pad), jnp.float32)
    adj = adj.at[dst, src].set(1.0)
    idx = jnp.arange(num_nodes)
    adj = adj.at[idx, idx].set(1.0)
    return adj.astype(jnp.bfloat16)


# ------------------------------ forward pass ----------------------------------

def nlayer_gat_forward(x, edge_index, params_list, tm=None):
    """Mirrors NLayerGAT.forward (ReLU between layers, none after the last)."""
    x = jnp.squeeze(x, axis=0)        # torch does x.squeeze(); batch dim is 1
    n, fin = x.shape
    if tm is None:
        tm = min(256, _round_up(n, 16))
    tm = _round_up(tm, 16)            # bf16 tiles want sublane multiples of 16
    n_pad = _round_up(n, tm)

    adj = build_dense_adj(edge_index, n, n_pad)
    h = jnp.zeros((n_pad, fin), jnp.float32).at[:n, :].set(x)

    num_layers = len(params_list)
    for i, params in enumerate(params_list):
        last = (i == num_layers - 1)
        h = gat_conv_pallas(h, adj, params, apply_relu=not last, tm=tm)
    out_f = params_list[-1]["hc"]
    return h[:n, :out_f]


if __name__ == "__main__":
    # Small deterministic config: N=32 nodes, in=8, hidden=4, heads=8,
    # num_layers=3, out_features=3  ->  layer dims 8 -> 32 -> 32 -> 3.
    N, IN_F, HIDDEN, HEADS, NUM_LAYERS, OUT_F = 32, 8, 4, 8, 3, 3

    key = jax.random.PRNGKey(0)
    kx, kp = jax.random.split(key)

    # Input (module squeezes the leading batch dim of 1).
    x = jax.random.normal(kx, (1, N, IN_F), jnp.float32)

    # Simple directed graph: ring edges + skip-3 edges (edge_index is [2, E]).
    nodes = jnp.arange(N, dtype=jnp.int32)
    src = jnp.concatenate([nodes, nodes])
    dst = jnp.concatenate([(nodes + 1) % N, (nodes + 3) % N])
    edge_index = jnp.stack([src, dst], axis=0)

    # Per-layer parameters (padded/packed for the kernels).
    layer_keys = jax.random.split(kp, NUM_LAYERS)
    params_list = [init_gat_params(layer_keys[0], IN_F, IN_F, HIDDEN, HEADS)]
    cur = HIDDEN * HEADS
    cur_pad = _round_up(cur, LANE)
    for li in range(1, NUM_LAYERS - 1):
        params_list.append(
            init_gat_params(layer_keys[li], cur, cur_pad, HIDDEN, HEADS))
    params_list.append(
        init_gat_params(layer_keys[-1], cur, cur_pad, OUT_F, 1))

    # tm=16 -> grid of 2 row tiles per kernel (exercises the pipeline).
    out = nlayer_gat_forward(x, edge_index, params_list, tm=16)
    out = jax.block_until_ready(out)
    assert out.shape == (N, OUT_F), out.shape
    assert bool(jnp.all(jnp.isfinite(out)))
    print("KERNEL_OK")
</pallas_src>

<mosaic_0001>
module attributes {stable_mosaic.version = 11 : i64} {
  func.func @_proj_kernel(%arg0: i32, %arg1: memref<16x8xf32, #tpu.memory_space<vmem>>, %arg2: memref<8x128xbf16, #tpu.memory_space<vmem>>, %arg3: memref<128x128xbf16, #tpu.memory_space<vmem>>, %arg4: memref<16x128xbf16, #tpu.memory_space<vmem>>, %arg5: memref<16x128xf32, #tpu.memory_space<vmem>>) attributes {dimension_semantics = [#tpu.dimension_semantics<parallel>], iteration_bounds = array<i64: 2>, scalar_prefetch = 0 : i64, scratch_operands = 0 : i64, tpu.core_type = #tpu.core_type<tc>, window_params = [{transform_indices = @transform_0, window_bounds = array<i64: 16, 8>}, {pipeline_mode = #tpu.pipeline_mode<synchronous>, transform_indices = @transform_1, window_bounds = array<i64: 8, 128>}, {pipeline_mode = #tpu.pipeline_mode<synchronous>, transform_indices = @transform_2, window_bounds = array<i64: 128, 128>}, {transform_indices = @transform_3, window_bounds = array<i64: 16, 128>}, {transform_indices = @transform_4, window_bounds = array<i64: 16, 128>}]} {
    %c0 = arith.constant 0 : index
    %c0_0 = arith.constant 0 : index
    %0 = vector.load %arg1[%c0, %c0_0] : memref<16x8xf32, #tpu.memory_space<vmem>>, vector<16x8xf32>
    %1 = arith.truncf %0 : vector<16x8xf32> to vector<16x8xbf16>
    %c0_1 = arith.constant 0 : index
    %c0_2 = arith.constant 0 : index
    %2 = vector.load %arg2[%c0_1, %c0_2] : memref<8x128xbf16, #tpu.memory_space<vmem>>, vector<8x128xbf16>
    %cst = arith.constant dense<0.000000e+00> : vector<16x128xf32>
    %3 = tpu.matmul %1, %2, %cst {dimension_numbers = #tpu.dot_dimension_numbers<[1], [0], [0], [1], [0, 0, 1, 1], [], []>} : vector<16x8xbf16>, vector<8x128xbf16>, vector<16x128xf32> -> vector<16x128xf32>
    %4 = arith.truncf %3 : vector<16x128xf32> to vector<16x128xbf16>
    %c0_3 = arith.constant 0 : index
    %c0_4 = arith.constant 0 : index
    %5 = vector.load %arg3[%c0_3, %c0_4] : memref<128x128xbf16, #tpu.memory_space<vmem>>, vector<128x128xbf16>
    %cst_5 = arith.constant dense<0.000000e+00> : vector<16x128xf32>
    %6 = tpu.matmul %4, %5, %cst_5 {dimension_numbers = #tpu.dot_dimension_numbers<[1], [0], [0], [1], [0, 0, 1, 1], [], []>} : vector<16x128xbf16>, vector<128x128xbf16>, vector<16x128xf32> -> vector<16x128xf32>
    %c0_6 = arith.constant 0 : index
    %c0_7 = arith.constant 0 : index
    %7 = vector.load %arg5[%c0_6, %c0_7] : memref<16x128xf32, #tpu.memory_space<vmem>>, vector<16x128xf32>
    tpu.vector_store %arg5[%c0_6, %c0_7], %6 {strides = array<i32>} : memref<16x128xf32, #tpu.memory_space<vmem>>, vector<16x128xf32>,
    %8 = arith.truncf %3 : vector<16x128xf32> to vector<16x128xbf16>
    %c0_8 = arith.constant 0 : index
    %c0_9 = arith.constant 0 : index
    %9 = vector.load %arg4[%c0_8, %c0_9] : memref<16x128xbf16, #tpu.memory_space<vmem>>, vector<16x128xbf16>
    tpu.vector_store %arg4[%c0_8, %c0_9], %8 {strides = array<i32>} : memref<16x128xbf16, #tpu.memory_space<vmem>>, vector<16x128xbf16>,
    return
  }
  func.func @transform_0(%arg0: i32) -> (i32, i32) {
    %c0_i32 = arith.constant 0 : i32
    %c0_i32_0 = arith.constant 0 : i32
    return %arg0, %c0_i32 : i32, i32
  }
  func.func @transform_1(%arg0: i32) -> (i32, i32) {
    %c0_i32 = arith.constant 0 : i32
    %c0_i32_0 = arith.constant 0 : i32
    %c0_i32_1 = arith.constant 0 : i32
    return %c0_i32, %c0_i32_0 : i32, i32
  }
  func.func @transform_2(%arg0: i32) -> (i32, i32) {
    %c0_i32 = arith.constant 0 : i32
    %c0_i32_0 = arith.constant 0 : i32
    %c0_i32_1 = arith.constant 0 : i32
    return %c0_i32, %c0_i32_0 : i32, i32
  }
  func.func @transform_3(%arg0: i32) -> (i32, i32) {
    %c0_i32 = arith.constant 0 : i32
    %c0_i32_0 = arith.constant 0 : i32
    return %arg0, %c0_i32 : i32, i32
  }
  func.func @transform_4(%arg0: i32) -> (i32, i32) {
    %c0_i32 = arith.constant 0 : i32
    %c0_i32_0 = arith.constant 0 : i32
    return %arg0, %c0_i32 : i32, i32
  }
}

</mosaic_0001>

<llo_original>
// kernel: tpu_custom_call.1
$region0: #{tpu_custom_call.1}
  #allocation0 [shape = 'u32[]', space=smem, size = 0x4, offset = 0x4, fixed_abs, tag = 'smem constant byte address 0x4 - core index']
  #allocation1 [shape = 'u32[144,128]{1,0:T(1,128)}', space=vmem, size = 0x12000, scoped, tag = 'internal scratch']
  %s0 = inlined_call_operand.vmem [shape: f32[32,8], index: 0, kind: input, shape index: {}]
  %s1 = inlined_call_operand.vmem [shape: bf16[8,128], index: 1, kind: input, shape index: {}]
  %s2 = inlined_call_operand.hbm [shape: bf16[128,128], index: 2, kind: input, shape index: {}]
  %s3 = inlined_call_operand.hbm [shape: bf16[32,128], index: 3, kind: output, shape index: {0}]
  %s4 = inlined_call_operand.hbm [shape: f32[32,128], index: 4, kind: output, shape index: {1}]
  %5 = xla_tuple %s3, %s4
  %s6 = sld [smem:[#allocation0]]
  $region57: #{tpu_custom_call.1} parent=0
    _
  %s8 = ssub.s32 1, %s6
  %s9 = scalar_select 0, %s8, %s6
  $region1: #{tpu_custom_call.1} parent=0
    #allocation2 [shape = 'u8[32768]{0}', space=vmem, size = 0x8000, scoped, tag = 'input window, operand 2, single buffered']
    #allocation3 [shape = 's32[2]{0}', space=sflag, size = 0x8, scoped, tag = 'scoped memory for tpu_custom_call.1']
    #allocation4 [shape = 's32[2]{0}', space=sflag, size = 0x8, scoped, tag = 'scoped memory for tpu_custom_call.1']
    #allocation5 [shape = 'u8[8192]{0}', space=vmem, size = 0x2000, scoped, tag = 'output window, operand 0']
    #allocation6 [shape = 'u8[16384]{0}', space=vmem, size = 0x4000, scoped, tag = 'output window, operand 1']
    #allocation7 [shape = 's32[2]{0}', space=sflag, size = 0x8, scoped, tag = 'scoped memory for tpu_custom_call.1']
    %10 = vsyncpa [#allocation3], 0
    %11 = vsyncpa [#allocation4], 0
    %s12 = scalar_lea.sflag [#allocation4], 1
    %13 = vsyncpa %s12, 0
    %14 = vsyncpa [#allocation7], 0
    %s15 = scalar_lea.sflag [#allocation7], 1
    %16 = vsyncpa %s15, 0
    loop: start=0, step=1, limit=4
    $region2: #{tpu_custom_call.1} parent=1 // loop_pre_header
      _
    $region3: #{tpu_custom_call.1} parent=1 // loop_header
      %s18 = sphi 0, %s22
      %p19 = scmp.ge.s32.totalorder %s18, 4
      %s28 = sphi 0, %s30
      %s31 = sphi 0, %s28
      %s32 = sphi 0, %s31
      %s48 = sphi 0, %s32
      %s52 = sphi 0, %s52
      %s54 = sphi 0, %s52
      %s55 = sphi 0, %s54
      %s69 = sphi 0, %s55
      %s73 = sphi 0, %s73
      %s75 = sphi 0, %s73
      %s76 = sphi 0, %s75
      %s90 = sphi 0, %s76
      %s96 = sphi 0, %s98
      %s99 = sphi 0, %s96
      %s100 = sphi 0, %s99
      %s116 = sphi 0, %s100
      %s122 = sphi 0, %s124
      %s125 = sphi 0, %s122
      %s126 = sphi 0, %s125
      %s142 = sphi 0, %s126
    $region4: #{tpu_custom_call.1} parent=1 // loop_header_branch
      %21 = sbr.rel (%p19) target = $region8
    $region5: #{tpu_custom_call.1} parent=1 // loop_body
      %s23 = ssub.s32 %s18, 1
      %s24 = ssub.s32 %s18, 2
      %s25 = sadd.s32 %s18, 1
      %s26 = ssub.s32 %s18, %s25
      %p27 = scmp.eq.s32.totalorder %s26, 0
      %s29 = sadd.s32 %s28, 1
      %s30 = scalar_select %p27, %s28, %s29
      %p33 = pneg %p27
      %p34 = scmp.eq.s32.totalorder %s18, 1
      %p35 = por %p33, %p34
      %p36 = scmp.ne.s32.totalorder %s28, %s31
      %p37 = scmp.eq.s32.totalorder %s18, 0
      %p38 = por %p36, %p37
      %p39 = scmp.ne.s32.totalorder %s28, %s31
      %p40 = scmp.eq.s32.totalorder %s23, 1
      %p41 = por %p39, %p40
      %p42 = scmp.ne.s32.totalorder %s31, %s32
      %p43 = scmp.eq.s32.totalorder %s23, 0
      %p44 = por %p42, %p43
      %p45 = scmp.ne.s32.totalorder %s31, %s32
      %p46 = scmp.eq.s32.totalorder %s24, 1
      %p47 = por %p45, %p46
      %p49 = scmp.ne.s32.totalorder %s32, %s48
      %p50 = scmp.eq.s32.totalorder %s24, 0
      %p51 = por %p49, %p50
      %s53 = sadd.s32 %s52, 1
      %p56 = scmp.eq.s32.totalorder %s18, 1
      %p57 = scmp.ne.s32.totalorder %s52, %s54
      %p58 = scmp.eq.s32.totalorder %s18, 0
      %p59 = por %p57, %p58
      %p60 = scmp.ne.s32.totalorder %s52, %s54
      %p61 = scmp.eq.s32.totalorder %s23, 1
      %p62 = por %p60, %p61
      %p63 = scmp.ne.s32.totalorder %s54, %s55
      %p64 = scmp.eq.s32.totalorder %s23, 0
      %p65 = por %p63, %p64
      %p66 = scmp.ne.s32.totalorder %s54, %s55
      %p67 = scmp.eq.s32.totalorder %s24, 1
      %p68 = por %p66, %p67
      %p70 = scmp.ne.s32.totalorder %s55, %s69
      %p71 = scmp.eq.s32.totalorder %s24, 0
      %p72 = por %p70, %p71
      %s74 = sadd.s32 %s73, 1
      %p77 = scmp.eq.s32.totalorder %s18, 1
      %p78 = scmp.ne.s32.totalorder %s73, %s75
      %p79 = scmp.eq.s32.totalorder %s18, 0
      %p80 = por %p78, %p79
      %p81 = scmp.ne.s32.totalorder %s73, %s75
      %p82 = scmp.eq.s32.totalorder %s23, 1
      %p83 = por %p81, %p82
      %p84 = scmp.ne.s32.totalorder %s75, %s76
      %p85 = scmp.eq.s32.totalorder %s23, 0
      %p86 = por %p84, %p85
      %p87 = scmp.ne.s32.totalorder %s75, %s76
      %p88 = scmp.eq.s32.totalorder %s24, 1
      %p89 = por %p87, %p88
      %p91 = scmp.ne.s32.totalorder %s76, %s90
      %p92 = scmp.eq.s32.totalorder %s24, 0
      %p93 = por %p91, %p92
      %s94 = ssub.s32 %s18, %s25
      %p95 = scmp.eq.s32.totalorder %s94, 0
      %s97 = sadd.s32 %s96, 1
      %s98 = scalar_select %p95, %s96, %s97
      %p101 = pneg %p95
      %p102 = scmp.eq.s32.totalorder %s18, 1
      %p103 = por %p101, %p102
      %p104 = scmp.ne.s32.totalorder %s96, %s99
      %p105 = scmp.eq.s32.totalorder %s18, 0
      %p106 = por %p104, %p105
      %p107 = scmp.ne.s32.totalorder %s96, %s99
      %p108 = scmp.eq.s32.totalorder %s23, 1
      %p109 = por %p107, %p108
      %p110 = scmp.ne.s32.totalorder %s99, %s100
      %p111 = scmp.eq.s32.totalorder %s23, 0
      %p112 = por %p110, %p111
      %p113 = scmp.ne.s32.totalorder %s99, %s100
      %p114 = scmp.eq.s32.totalorder %s24, 1
      %p115 = por %p113, %p114
      %p117 = scmp.ne.s32.totalorder %s100, %s116
      %p118 = scmp.eq.s32.totalorder %s24, 0
      %p119 = por %p117, %p118
      %s120 = ssub.s32 %s18, %s25
      %p121 = scmp.eq.s32.totalorder %s120, 0
      %s123 = sadd.s32 %s122, 1
      %s124 = scalar_select %p121, %s122, %s123
      %p127 = pneg %p121
      %p128 = scmp.eq.s32.totalorder %s18, 1
      %p129 = por %p127, %p128
      %p130 = scmp.ne.s32.totalorder %s122, %s125
      %p131 = scmp.eq.s32.totalorder %s18, 0
      %p132 = por %p130, %p131
      %p133 = scmp.ne.s32.totalorder %s122, %s125
      %p134 = scmp.eq.s32.totalorder %s23, 1
      %p135 = por %p133, %p134
      %p136 = scmp.ne.s32.totalorder %s125, %s126
      %p137 = scmp.eq.s32.totalorder %s23, 0
      %p138 = por %p136, %p137
      %p139 = scmp.ne.s32.totalorder %s125, %s126
      %p140 = scmp.eq.s32.totalorder %s24, 1
      %p141 = por %p139, %p140
      %p143 = scmp.ne.s32.totalorder %s126, %s142
      %p144 = scmp.eq.s32.totalorder %s24, 0
      %p145 = por %p143, %p144
      %p146 = scmp.le.s32.totalorder 1, %s18
      %p147 = scmp.lt.s32.totalorder %s18, 3
      %p148 = pnand %p146, %p147
      %p149 = pneg %p148
      // Predicated region
      $region9: #{tpu_custom_call.1} parent=5 // pred_check
        _
      $region10: #{tpu_custom_call.1} parent=5 // pred_check_branch
        %151 = sbr.rel (%p148) target = $region12
      $region11: #{tpu_custom_call.1} parent=5 // pred_region
        %s152 = ssub.s32 %s18, 1
        // Predicated region
        $region13: #{tpu_custom_call.1} parent=11 // pred_check
          %p153 = pneg %p65
        $region14: #{tpu_custom_call.1} parent=11 // pred_check_branch
          %155 = sbr.rel (%p153) target = $region16
        $region15: #{tpu_custom_call.1} parent=11 // pred_region
          _
        $region16: #{tpu_custom_call.1} parent=11 // pred_fallthru
          _
        // Predicated region
        $region17: #{tpu_custom_call.1} parent=11 // pred_check
          %p156 = pneg %p86
        $region18: #{tpu_custom_call.1} parent=11 // pred_check_branch
          %158 = sbr.rel (%p156) target = $region20
        $region19: #{tpu_custom_call.1} parent=11 // pred_region
          %s160 = ssub.s32 1024, 1024
          %161 = vsyncadd [#allocation3], %s160
          %s162 = sshll.u32 [#allocation2], 4
          %s163 = int_to_ptr.vmem [resolvable:$true] %s162
          %168 = dma.hbm_to_vmem [thread:$0]  %s2, 1024, %s163, [#allocation3], 64, 64, 4
        $region20: #{tpu_custom_call.1} parent=11 // pred_fallthru
          _
      $region12: #{tpu_custom_call.1} parent=5 // pred_fallthru
        _
      %p169 = scmp.lt.s32.totalorder %s18, 2
      // Predicated region
      $region21: #{tpu_custom_call.1} parent=5 // pred_check
        %p170 = pneg %p169
      $region22: #{tpu_custom_call.1} parent=5 // pred_check_branch
        %172 = sbr.rel (%p170) target = $region24
      $region23: #{tpu_custom_call.1} parent=5 // pred_region
        // Predicated region
        $region25: #{tpu_custom_call.1} parent=23 // pred_check
          %p173 = pneg %p38
        $region26: #{tpu_custom_call.1} parent=23 // pred_check_branch
          %175 = sbr.rel (%p173) target = $region28
        $region27: #{tpu_custom_call.1} parent=23 // pred_region
          %s176 = smul.u32 2, %s18
          %p177 = scmp.lt.s32.totalorder %s176, 3
          %s178 = scalar_select %p177, %s176, 3
          %s179 = smul.addr %s178, 8
          %s180 = scalar_lea.vmem %s0, %s179
          %s181 = smul.u32 2, %s18
        $region28: #{tpu_custom_call.1} parent=23 // pred_fallthru
          _
      $region24: #{tpu_custom_call.1} parent=5 // pred_fallthru
        _
      %p182 = scmp.le.s32.totalorder 1, %s18
      %p183 = scmp.lt.s32.totalorder %s18, 3
      %p184 = pnand %p182, %p183
      %p185 = pneg %p184
      // Predicated region
      $region29: #{tpu_custom_call.1} parent=5 // pred_check
        _
      $region30: #{tpu_custom_call.1} parent=5 // pred_check_branch
        %187 = sbr.rel (%p184) target = $region32
      $region31: #{tpu_custom_call.1} parent=5 // pred_region
        %s188 = ssub.s32 %s18, 1
        // Predicated region
        $region33: #{tpu_custom_call.1} parent=31 // pred_check
          %p189 = pneg %p86
        $region34: #{tpu_custom_call.1} parent=31 // pred_check_branch
          %191 = sbr.rel (%p189) target = $region36
        $region35: #{tpu_custom_call.1} parent=31 // pred_region
          %192 = dma.done [#allocation3], 1024
        $region36: #{tpu_custom_call.1} parent=31 // pred_fallthru
          _
        %s193 = smul.u32 2, %s23
        %p194 = scmp.lt.s32.totalorder %s193, 3
        %s195 = scalar_select %p194, %s193, 3
        %s196 = smul.addr %s195, 8
        %s197 = scalar_lea.vmem %s0, %s196
        %p198 = pneg %p44
        %p199 = pneg %p41
        %p200 = pneg %p65
        %p201 = pneg %p62
        %p202 = pneg %p86
        %p203 = pneg %p83
        %p204 = pneg %p112
        %p205 = pneg %p109
        %s206 = sand.u32 %s99, 1
        %s207 = scalar_lea.sflag [#allocation4], %s206
        %s208 = sand.u32 %s99, 1
        %s209 = smul.addr %s208, 8
        %s210 = scalar_lea.vmem [#allocation5], %s209
        %p211 = pneg %p138
        %p212 = pneg %p135
        %s213 = sand.u32 %s125, 1
        %s214 = scalar_lea.sflag [#allocation7], %s213
        %s215 = sand.u32 %s125, 1
        %s216 = smul.addr %s215, 16
        %s217 = scalar_lea.vmem [#allocation6], %s216
        %s218 = smul.u32 2, %s23
        %p219 = scmp.lt.s32.totalorder %s218, 3
        %s220 = scalar_select %p219, %s218, 3
        %s221 = smul.addr %s220, 8
        %s222 = scalar_lea.vmem %s0, %s221
        %s223 = smul.u32 2, %s23
        %s224 = smul.u32 2, %s23
        %s225 = smul.u32 2, %s23
        %v227 = vld [vmem:[%s222] sm:$0xff]
        %v228 = vld [vmem:[%s222 + $0x8] sm:$0xff]
        %v229 = vpack.c.bf16 %v228, %v227
        %v230 = vld [vmem:[%s1] sm:$0xf]
        %vm231 = vcmask 64512
        %v233 = vsel %vm231, %v229, 0
        %vm235 = vcmask 1043456
        %v237 = vsel %vm235, %v230, 0
        %239 = vmatprep.subr.bf16.mxu0 0
        %240 = vmatpush1.bf16.msra.mxu0 0
        %241 = vmatprep.subr.bf16.mxu0 0
        %242 = vmatpush1.bf16.msra.mxu0 0
        %243 = vmatprep.subr.bf16.mxu0 0
        %244 = vmatpush1.bf16.msra.mxu0 0
        %245 = vmatprep.subr.bf16.mxu0 0
        %246 = vmatpush1.bf16.msra.mxu0 0
        %247 = vmatprep.subr.bf16.mxu0 0
        %248 = vmatpush1.bf16.msra.mxu0 0
        %249 = vmatprep.subr.bf16.mxu0 0
        %250 = vmatpush1.bf16.msra.mxu0 0
        %251 = vmatprep.subr.bf16.mxu0 0
        %252 = vmatpush1.bf16.msra.mxu0 0
        %253 = vmatprep.subr.bf16.mxu0 0
        %254 = vmatpush1.bf16.msra.mxu0 %v237
        %255 = vmatprep.subr.bf16.mxu0 0
        %256 = vmatpush2.bf16.msra.mxu0 0
        %257 = vmatprep.subr.bf16.mxu0 0
        %258 = vmatpush2.bf16.msra.mxu0 0
        %259 = vmatprep.subr.bf16.mxu0 0
        %260 = vmatpush2.bf16.msra.mxu0 0
        %261 = vmatprep.subr.bf16.mxu0 0
        %262 = vmatpush2.bf16.msra.mxu0 0
        %263 = vmatprep.subr.bf16.mxu0 0
        %264 = vmatpush2.bf16.msra.mxu0 0
        %265 = vmatprep.subr.bf16.mxu0 0
        %266 = vmatpush2.bf16.msra.mxu0 0
        %267 = vmatprep.subr.bf16.mxu0 0
        %268 = vmatpush2.bf16.msra.mxu0 0
        %269 = vmatprep.subr.bf16.mxu0 0
        %270 = vmatpush2.bf16.msra.mxu0 0
        %271 = vmatprep.mubr.bf16.mxu0 0
        %272 = vmatmul.mubr.bf16.gmra.mxu0 %v233
        %v273 = vpop.f32.mrf.mxu0
        %v274 = vadd.f32 0.0, %v273
        %v275 = vpop.f32.mrf.mxu0
        %v276 = vpop.f32.mrf.mxu0
        %v277 = vadd.f32 0.0, %v276
        %v278 = vpop.f32.mrf.mxu0
        %279 = vdwg.mxu0
        %v280 = vpack.c.bf16 %v277, %v274
        %v281 = vld [vmem:[#allocation2] sm:$0xf]
        %v282 = vld [vmem:[#allocation2 + $0x4] sm:$0xf]
        %v283 = vld [vmem:[#allocation2 + $0x8] sm:$0xf]
        %v284 = vld [vmem:[#allocation2 + $0xc] sm:$0xf]
        %v285 = vld [vmem:[#allocation2 + $0x10] sm:$0xf]
        %v286 = vld [vmem:[#allocation2 + $0x14] sm:$0xf]
        %v287 = vld [vmem:[#allocation2 + $0x18] sm:$0xf]
        %v288 = vld [vmem:[#allocation2 + $0x1c] sm:$0xf]
        %v289 = vld [vmem:[#allocation2 + $0x20] sm:$0xf]
        %v290 = vld [vmem:[#allocation2 + $0x24] sm:$0xf]
        %v291 = vld [vmem:[#allocation2 + $0x28] sm:$0xf]
        %v292 = vld [vmem:[#allocation2 + $0x2c] sm:$0xf]
        %v293 = vld [vmem:[#allocation2 + $0x30] sm:$0xf]
        %v294 = vld [vmem:[#allocation2 + $0x34] sm:$0xf]
        %v295 = vld [vmem:[#allocation2 + $0x38] sm:$0xf]
        %v296 = vld [vmem:[#allocation2 + $0x3c] sm:$0xf]
        %v313 = vunpack.c.l.b16 %v281
        %v314 = vunpack.c.l.b16 %v282
        %v315 = vunpack.c.l.b16 %v283
        %v316 = vunpack.c.l.b16 %v284
        %v317 = vunpack.c.l.b16 %v285
        %v318 = vunpack.c.l.b16 %v286
        %v319 = vunpack.c.l.b16 %v287
        %v320 = vunpack.c.l.b16 %v288
        %v321 = vunpack.c.l.b16 %v289
        %v322 = vunpack.c.l.b16 %v290
        %v323 = vunpack.c.l.b16 %v291
        %v324 = vunpack.c.l.b16 %v292
        %v325 = vunpack.c.l.b16 %v293
        %v326 = vunpack.c.l.b16 %v294
        %v327 = vunpack.c.l.b16 %v295
        %v328 = vunpack.c.l.b16 %v296
        %v329 = vpack.c.b16 %v314, %v313
        %v330 = vpack.c.b16 %v316, %v315
        %v331 = vpack.c.b16 %v318, %v317
        %v332 = vpack.c.b16 %v320, %v319
        %v333 = vpack.c.b16 %v322, %v321
        %v334 = vpack.c.b16 %v324, %v323
        %v335 = vpack.c.b16 %v326, %v325
        %v336 = vpack.c.b16 %v328, %v327
        %345 = vmatprep.subr.bf16.mxu0 0
        %346 = vmatpush1.bf16.msra.mxu0 %v336
        %347 = vmatprep.subr.bf16.mxu0 0
        %348 = vmatpush1.bf16.msra.mxu0 %v335
        %349 = vmatprep.subr.bf16.mxu0 0
        %350 = vmatpush1.bf16.msra.mxu0 %v334
        %351 = vmatprep.subr.bf16.mxu0 0
        %352 = vmatpush1.bf16.msra.mxu0 %v333
        %353 = vmatprep.subr.bf16.mxu0 0
        %354 = vmatpush1.bf16.msra.mxu0 %v332
        %355 = vmatprep.subr.bf16.mxu0 0
        %356 = vmatpush1.bf16.msra.mxu0 %v331
        %357 = vmatprep.subr.bf16.mxu0 0
        %358 = vmatpush1.bf16.msra.mxu0 %v330
        %359 = vmatprep.subr.bf16.mxu0 0
        %360 = vmatpush1.bf16.msra.mxu0 %v329
        %361 = vmatprep.subr.bf16.mxu0 0
        %362 = vmatpush2.bf16.msra.mxu0 0
        %363 = vmatprep.subr.bf16.mxu0 0
        %364 = vmatpush2.bf16.msra.mxu0 0
        %365 = vmatprep.subr.bf16.mxu0 0
        %366 = vmatpush2.bf16.msra.mxu0 0
        %367 = vmatprep.subr.bf16.mxu0 0
        %368 = vmatpush2.bf16.msra.mxu0 0
        %369 = vmatprep.subr.bf16.mxu0 0
        %370 = vmatpush2.bf16.msra.mxu0 0
        %371 = vmatprep.subr.bf16.mxu0 0
        %372 = vmatpush2.bf16.msra.mxu0 0
        %373 = vmatprep.subr.bf16.mxu0 0
        %374 = vmatpush2.bf16.msra.mxu0 0
        %375 = vmatprep.subr.bf16.mxu0 0
        %376 = vmatpush2.bf16.msra.mxu0 0
        %377 = vmatprep.mubr.bf16.mxu0 0
        %378 = vmatmul.mubr.bf16.gmra.mxu0 %v280
        %v379 = vpop.f32.mrf.mxu0
        %v380 = vadd.f32 0.0, %v379
        %v381 = vpop.f32.mrf.mxu0
        %v382 = vpop.f32.mrf.mxu0
        %v383 = vadd.f32 0.0, %v382
        %v384 = vpop.f32.mrf.mxu0
        %385 = vdwg.mxu0
        %386 = vst [vmem:[%s217] sm:$0xff] %v380
        %387 = vst [vmem:[%s217 + $0x8] sm:$0xff] %v383
        %v389 = vunpack.c.l.b16 %v280
        %v390 = vunpack.c.h.b16 %v280
        %v391 = vpack.c.b16 %v389, %v389
        %v392 = vpack.c.b16 %v390, %v390
        %395 = vst [vmem:[%s210] sm:$0xf] %v391
        %396 = vst [vmem:[%s210 + $0x4] sm:$0xf] %v392
        %s397 = sand.u32 %s99, 1
        %s398 = scalar_lea.sflag [#allocation4], %s397
        %s399 = sand.u32 %s99, 1
        %s400 = smul.addr %s399, 8
        %s401 = scalar_lea.vmem [#allocation5], %s400
        %s402 = sand.u32 %s125, 1
        %s403 = scalar_lea.sflag [#allocation7], %s402
        %s404 = sand.u32 %s125, 1
        %s405 = smul.addr %s404, 16
        %s406 = scalar_lea.vmem [#allocation6], %s405
        // Predicated region
        $region37: #{tpu_custom_call.1} parent=31 // pred_check
          %p407 = pneg %p109
        $region38: #{tpu_custom_call.1} parent=31 // pred_check_branch
          %409 = sbr.rel (%p407) target = $region40
        $region39: #{tpu_custom_call.1} parent=31 // pred_region
          %s410 = smul.u32 2, %s23
          %s412 = ssub.s32 128, 128
          %413 = vsyncadd %s398, %s412
          %s414 = smul.addr %s410, 64
          %s415 = scalar_lea.hbm %s3, %s414
          %s416 = sshll.u32 %s401, 4
          %s417 = int_to_ptr.vmem [resolvable:$true] %s416
          %422 = dma.vmem_to_hbm [thread:$0]  %s417, 128, %s415, %s398, 64, 64, 4
        $region40: #{tpu_custom_call.1} parent=31 // pred_fallthru
          _
        // Predicated region
        $region41: #{tpu_custom_call.1} parent=31 // pred_check
          %p423 = pneg %p135
        $region42: #{tpu_custom_call.1} parent=31 // pred_check_branch
          %425 = sbr.rel (%p423) target = $region44
        $region43: #{tpu_custom_call.1} parent=31 // pred_region
          %s426 = smul.u32 2, %s23
          %s428 = ssub.s32 256, 256
          %429 = vsyncadd %s403, %s428
          %s430 = smul.addr %s426, 128
          %s431 = scalar_lea.hbm %s4, %s430
          %s432 = sshll.u32 %s406, 4
          %s433 = int_to_ptr.vmem [resolvable:$true] %s432
          %438 = dma.vmem_to_hbm [thread:$0]  %s433, 256, %s431, %s403, 128, 128, 8
        $region44: #{tpu_custom_call.1} parent=31 // pred_fallthru
          _
      $region32: #{tpu_custom_call.1} parent=5 // pred_fallthru
        _
      %p439 = scmp.le.s32.totalorder 2, %s18
      // Predicated region
      $region45: #{tpu_custom_call.1} parent=5 // pred_check
        %p440 = pneg %p439
      $region46: #{tpu_custom_call.1} parent=5 // pred_check_branch
        %442 = sbr.rel (%p440) target = $region48
      $region47: #{tpu_custom_call.1} parent=5 // pred_region
        %s443 = ssub.s32 %s18, 2
        // Predicated region
        $region49: #{tpu_custom_call.1} parent=47 // pred_check
          %p444 = pneg %p115
        $region50: #{tpu_custom_call.1} parent=47 // pred_check_branch
          %446 = sbr.rel (%p444) target = $region52
        $region51: #{tpu_custom_call.1} parent=47 // pred_region
          %s447 = sand.u32 %s100, 1
          %s448 = scalar_lea.sflag [#allocation4], %s447
          %s449 = sand.u32 %s100, 1
          %s450 = smul.addr %s449, 8
          %s451 = scalar_lea.vmem [#allocation5], %s450
          %452 = dma.done %s448, 128
        $region52: #{tpu_custom_call.1} parent=47 // pred_fallthru
          _
        // Predicated region
        $region53: #{tpu_custom_call.1} parent=47 // pred_check
          %p453 = pneg %p141
        $region54: #{tpu_custom_call.1} parent=47 // pred_check_branch
          %455 = sbr.rel (%p453) target = $region56
        $region55: #{tpu_custom_call.1} parent=47 // pred_region
          %s456 = sand.u32 %s126, 1
          %s457 = scalar_lea.sflag [#allocation7], %s456
          %s458 = sand.u32 %s126, 1
          %s459 = smul.addr %s458, 16
          %s460 = scalar_lea.vmem [#allocation6], %s459
          %461 = dma.done %s457, 256
        $region56: #{tpu_custom_call.1} parent=47 // pred_fallthru
          _
      $region48: #{tpu_custom_call.1} parent=5 // pred_fallthru
        _
    $region6: #{tpu_custom_call.1} parent=1 // loop_footer
      %s22 = sadd.s32 1, %s18
    $region7: #{tpu_custom_call.1} parent=1 // loop_footer_branch
      %17 = sbr.rel target = $region3
    $region8: #{tpu_custom_call.1} parent=1 // loop_exit
      _
    %462 = vsyncpa [#allocation3], 1
    %s463 = scalar_lea.sflag [#allocation3], 1
    %464 = vsyncpa %s463, 1
    %465 = vsyncpa [#allocation4], 1
    %s466 = scalar_lea.sflag [#allocation4], 1
    %467 = vsyncpa %s466, 1
    %468 = vsyncpa [#allocation7], 1
    %s469 = scalar_lea.sflag [#allocation7], 1
    %470 = vsyncpa %s469, 1

</llo_original>
